<compile_context>
chip_gen: v7x
topology: tpu7x:2x2x1
jax: 0.10.0
libtpu: 0.0.40
codegen_flags: <defaults>
</compile_context>

<pallas_src>
import jax
import jax.numpy as jnp
from jax.experimental import pallas as pl
from jax.experimental.pallas import tpu as pltpu

_LANE = 128


def _round_up(x, m):
    return ((x + m - 1) // m) * m


def _mlp_kernel(x_ref, w1_ref, b1_ref, w2_ref, b2_ref, w3_ref, b3_ref, o_ref):
    x = x_ref[...]

    # fc1 + ReLU  (f32 accumulation on the MXU; bias add + ReLU in f32)
    h1 = jnp.dot(x, w1_ref[...], preferred_element_type=jnp.float32) + b1_ref[...]
    h1 = jnp.maximum(h1, 0.0).astype(w2_ref.dtype)

    # fc2 + ReLU
    h2 = jnp.dot(h1, w2_ref[...], preferred_element_type=jnp.float32) + b2_ref[...]
    h2 = jnp.maximum(h2, 0.0).astype(w3_ref.dtype)

    # fc3 (raw logits, no activation) -- unpadded (tb, n_actions) store
    o_ref[...] = (
        jnp.dot(h2, w3_ref[...], preferred_element_type=jnp.float32) + b3_ref[...]
    ).astype(o_ref.dtype)


def policy_gradient_forward(obs, params, *, block_b=2048,
                            compute_dtype=jnp.float32, min_pallas_batch=64):
    """Forward pass of PolicyGradientNetwork.

    obs:     (B, D_in) float array.
    params:  (w1, b1, w2, b2, w3, b3); weights stored (in_features, out_features),
             biases (1, out_features)  [transposed vs. PyTorch nn.Linear].
    """
    w1, b1, w2, b2, w3, b3 = params
    B, d_in = obs.shape
    h1_dim = w1.shape[1]
    h2_dim = w2.shape[1]
    n_actions = w3.shape[1]

    # Tiny action-selection batches: launch + DMA latency dominates; plain jnp wins.
    if B < min_pallas_batch:
        x = jnp.maximum(obs @ w1 + b1, 0.0)
        x = jnp.maximum(x @ w2 + b2, 0.0)
        return x @ w3 + b3

    itemsize = jnp.dtype(compute_dtype).itemsize
    sub = {4: 8, 2: 16, 1: 32}[itemsize]   # sublane packing multiple per dtype

    # Only hidden dims are 128-padded (weights are VMEM-resident, loaded once);
    # d_in and n_actions stay at their true sizes for lean HBM streaming.
    h1_p = _round_up(h1_dim, _LANE)
    h2_p = _round_up(h2_dim, _LANE)

    def pad2(a, rows, cols, dtype):
        return jnp.pad(a, ((0, rows - a.shape[0]), (0, cols - a.shape[1]))).astype(dtype)

    w1p = pad2(w1, d_in, h1_p, compute_dtype)        # (d_in, h1_p)
    w2p = pad2(w2, h1_p, h2_p, compute_dtype)        # (h1_p, h2_p)
    w3p = pad2(w3, h2_p, n_actions, compute_dtype)   # (h2_p, n_actions)
    b1p = pad2(b1, 1, h1_p, jnp.float32)             # biases stay f32 (added post-MXU)
    b2p = pad2(b2, 1, h2_p, jnp.float32)
    b3p = b3.astype(jnp.float32)                     # (1, n_actions)

    # Batch tile: big enough to amortize per-step overhead, capped at ceil(B/2)
    # (rounded to the sublane multiple) so the grid has >= 2 steps for v7x megacore.
    tb = min(_round_up(block_b, sub), _round_up(pl.cdiv(B, 2), sub))
    tb = max(tb, sub)
    grid = (pl.cdiv(B, tb),)   # no batch padding; Pallas masks the partial last block

    obs_c = obs.astype(compute_dtype)   # no-op for the default f32 path

    def resident(shape):
        # constant index_map -> block stays VMEM-resident across grid steps
        return pl.BlockSpec(shape, lambda i: (0, 0))

    in_specs = [
        pl.BlockSpec((tb, d_in), lambda i: (i, 0)),   # streamed obs tile (pipelined)
        resident((d_in, h1_p)), resident((1, h1_p)),
        resident((h1_p, h2_p)), resident((1, h2_p)),
        resident((h2_p, n_actions)), resident((1, n_actions)),
    ]
    out_specs = pl.BlockSpec((tb, n_actions), lambda i: (i, 0))

    # Advisory cost from the *real* streamed / computed sizes.
    cost = pl.CostEstimate(
        flops=2 * B * (d_in * h1_dim + h1_dim * h2_dim + h2_dim * n_actions),
        transcendentals=0,
        bytes_accessed=(
            B * d_in * itemsize
            + (d_in * h1_p + h1_p * h2_p + h2_p * n_actions) * itemsize
            + (h1_p + h2_p + n_actions) * 4
            + B * n_actions * 4
        ),
    )

    return pl.pallas_call(
        _mlp_kernel,
        out_shape=jax.ShapeDtypeStruct((B, n_actions), jnp.float32),
        grid=grid,
        in_specs=in_specs,
        out_specs=out_specs,
        compiler_params=pltpu.CompilerParams(
            dimension_semantics=("parallel",),   # megacore sharding on v7x
        ),
        cost_estimate=cost,
    )(obs_c, w1p, b1p, w2p, b2p, w3p, b3p)


def init_params(key, input_dim, fc1_dims, fc2_dims, n_actions):
    """PyTorch nn.Linear-style init: U(-1/sqrt(fan_in), 1/sqrt(fan_in)).

    Weights stored (in_features, out_features); biases (1, out_features).
    """
    def linear(k, fan_in, fan_out):
        kw, kb = jax.random.split(k)
        bound = 1.0 / jnp.sqrt(jnp.float32(fan_in))
        w = jax.random.uniform(kw, (fan_in, fan_out), jnp.float32, -bound, bound)
        b = jax.random.uniform(kb, (1, fan_out), jnp.float32, -bound, bound)
        return w, b

    k1, k2, k3 = jax.random.split(key, 3)
    w1, b1 = linear(k1, input_dim, fc1_dims)
    w2, b2 = linear(k2, fc1_dims, fc2_dims)
    w3, b3 = linear(k3, fc2_dims, n_actions)
    return (w1, b1, w2, b2, w3, b3)


if __name__ == "__main__":
    # Shapes consistent with the module: input_dims=(16,), fc1=32, fc2=32, n_actions=8
    input_dim, fc1_dims, fc2_dims, n_actions = 16, 32, 32, 8

    key = jax.random.PRNGKey(0)
    k_obs, k_params = jax.random.split(key)
    params = init_params(k_params, input_dim, fc1_dims, fc2_dims, n_actions)
    w1, b1, w2, b2, w3, b3 = params

    def ref_fwd(o):
        x = jnp.maximum(o @ w1 + b1, 0.0)
        x = jnp.maximum(x @ w2 + b2, 0.0)
        return x @ w3 + b3

    # --- main Pallas-kernel path (batch large enough to use the kernel) ---
    obs = jax.random.normal(k_obs, (128, input_dim), jnp.float32)
    logits = policy_gradient_forward(obs, params)
    jax.block_until_ready(logits)
    assert logits.shape == (128, n_actions)
    assert jnp.allclose(logits, ref_fwd(obs), atol=1e-5, rtol=1e-5)

    # --- non-divisible batch -> partial last grid block (masked writeback) ---
    obs_odd = jax.random.normal(jax.random.PRNGKey(1), (300, input_dim), jnp.float32)
    logits_odd = policy_gradient_forward(obs_odd, params, block_b=256)
    jax.block_until_ready(logits_odd)
    assert logits_odd.shape == (300, n_actions)
    assert jnp.allclose(logits_odd, ref_fwd(obs_odd), atol=1e-5, rtol=1e-5)

    # --- tiny action-selection batch -> plain-jnp fast path ---
    obs_tiny = jax.random.normal(jax.random.PRNGKey(2), (4, input_dim), jnp.float32)
    logits_tiny = policy_gradient_forward(obs_tiny, params)
    jax.block_until_ready(logits_tiny)
    assert logits_tiny.shape == (4, n_actions)
    assert jnp.allclose(logits_tiny, ref_fwd(obs_tiny), atol=1e-5, rtol=1e-5)

    # --- bf16 streaming (v5e bandwidth path), f32 accumulation, loose tolerance ---
    logits_bf16 = policy_gradient_forward(obs, params, compute_dtype=jnp.bfloat16)
    jax.block_until_ready(logits_bf16)
    assert logits_bf16.shape == (128, n_actions)
    assert jnp.allclose(logits_bf16, ref_fwd(obs), atol=1e-1, rtol=1e-1)

    print("KERNEL_OK")
</pallas_src>

<mosaic_0001>
module attributes {stable_mosaic.version = 11 : i64} {
  func.func @_mlp_kernel(%arg0: i32, %arg1: memref<64x16xf32, #tpu.memory_space<vmem>>, %arg2: memref<16x128xf32, #tpu.memory_space<vmem>>, %arg3: memref<1x128xf32, #tpu.memory_space<vmem>>, %arg4: memref<128x128xf32, #tpu.memory_space<vmem>>, %arg5: memref<1x128xf32, #tpu.memory_space<vmem>>, %arg6: memref<128x8xf32, #tpu.memory_space<vmem>>, %arg7: memref<1x8xf32, #tpu.memory_space<vmem>>, %arg8: memref<64x8xf32, #tpu.memory_space<vmem>>) attributes {dimension_semantics = [#tpu.dimension_semantics<parallel>], iteration_bounds = array<i64: 2>, scalar_prefetch = 0 : i64, scratch_operands = 0 : i64, tpu.core_type = #tpu.core_type<tc>, window_params = [{transform_indices = @transform_0, window_bounds = array<i64: 64, 16>}, {pipeline_mode = #tpu.pipeline_mode<synchronous>, transform_indices = @transform_1, window_bounds = array<i64: 16, 128>}, {pipeline_mode = #tpu.pipeline_mode<synchronous>, transform_indices = @transform_2, window_bounds = array<i64: 1, 128>}, {pipeline_mode = #tpu.pipeline_mode<synchronous>, transform_indices = @transform_3, window_bounds = array<i64: 128, 128>}, {pipeline_mode = #tpu.pipeline_mode<synchronous>, transform_indices = @transform_4, window_bounds = array<i64: 1, 128>}, {pipeline_mode = #tpu.pipeline_mode<synchronous>, transform_indices = @transform_5, window_bounds = array<i64: 128, 8>}, {pipeline_mode = #tpu.pipeline_mode<synchronous>, transform_indices = @transform_6, window_bounds = array<i64: 1, 8>}, {transform_indices = @transform_7, window_bounds = array<i64: 64, 8>}]} {
    %c0 = arith.constant 0 : index
    %c0_0 = arith.constant 0 : index
    %0 = vector.load %arg1[%c0, %c0_0] : memref<64x16xf32, #tpu.memory_space<vmem>>, vector<64x16xf32>
    %c0_1 = arith.constant 0 : index
    %c0_2 = arith.constant 0 : index
    %1 = vector.load %arg2[%c0_1, %c0_2] : memref<16x128xf32, #tpu.memory_space<vmem>>, vector<16x128xf32>
    %cst = arith.constant dense<0.000000e+00> : vector<64x128xf32>
    %2 = tpu.matmul %0, %1, %cst {dimension_numbers = #tpu.dot_dimension_numbers<[1], [0], [0], [1], [0, 0, 1, 1], [], []>} : vector<64x16xf32>, vector<16x128xf32>, vector<64x128xf32> -> vector<64x128xf32>
    %c0_3 = arith.constant 0 : index
    %c0_4 = arith.constant 0 : index
    %3 = vector.load %arg3[%c0_3, %c0_4] : memref<1x128xf32, #tpu.memory_space<vmem>>, vector<1x128xf32>
    %4 = vector.broadcast %3 : vector<1x128xf32> to vector<64x128xf32>
    %5 = arith.addf %2, %4 : vector<64x128xf32>
    %cst_5 = arith.constant 0.000000e+00 : f32
    %6 = vector.broadcast %cst_5 : f32 to vector<64x128xf32>
    %7 = arith.maximumf %5, %6 : vector<64x128xf32>
    %c0_6 = arith.constant 0 : index
    %c0_7 = arith.constant 0 : index
    %8 = vector.load %arg4[%c0_6, %c0_7] : memref<128x128xf32, #tpu.memory_space<vmem>>, vector<128x128xf32>
    %cst_8 = arith.constant dense<0.000000e+00> : vector<64x128xf32>
    %9 = tpu.matmul %7, %8, %cst_8 {dimension_numbers = #tpu.dot_dimension_numbers<[1], [0], [0], [1], [0, 0, 1, 1], [], []>} : vector<64x128xf32>, vector<128x128xf32>, vector<64x128xf32> -> vector<64x128xf32>
    %c0_9 = arith.constant 0 : index
    %c0_10 = arith.constant 0 : index
    %10 = vector.load %arg5[%c0_9, %c0_10] : memref<1x128xf32, #tpu.memory_space<vmem>>, vector<1x128xf32>
    %11 = vector.broadcast %10 : vector<1x128xf32> to vector<64x128xf32>
    %12 = arith.addf %9, %11 : vector<64x128xf32>
    %cst_11 = arith.constant 0.000000e+00 : f32
    %13 = vector.broadcast %cst_11 : f32 to vector<64x128xf32>
    %14 = arith.maximumf %12, %13 : vector<64x128xf32>
    %c0_12 = arith.constant 0 : index
    %c0_13 = arith.constant 0 : index
    %15 = vector.load %arg6[%c0_12, %c0_13] : memref<128x8xf32, #tpu.memory_space<vmem>>, vector<128x8xf32>
    %cst_14 = arith.constant dense<0.000000e+00> : vector<64x8xf32>
    %16 = tpu.matmul %14, %15, %cst_14 {dimension_numbers = #tpu.dot_dimension_numbers<[1], [0], [0], [1], [0, 0, 1, 1], [], []>} : vector<64x128xf32>, vector<128x8xf32>, vector<64x8xf32> -> vector<64x8xf32>
    %c0_15 = arith.constant 0 : index
    %c0_16 = arith.constant 0 : index
    %17 = vector.load %arg7[%c0_15, %c0_16] : memref<1x8xf32, #tpu.memory_space<vmem>>, vector<1x8xf32>
    %18 = vector.broadcast %17 : vector<1x8xf32> to vector<64x8xf32>
    %19 = arith.addf %16, %18 : vector<64x8xf32>
    %c0_17 = arith.constant 0 : index
    %c0_18 = arith.constant 0 : index
    %20 = vector.load %arg8[%c0_17, %c0_18] : memref<64x8xf32, #tpu.memory_space<vmem>>, vector<64x8xf32>
    tpu.vector_store %arg8[%c0_17, %c0_18], %19 {strides = array<i32>} : memref<64x8xf32, #tpu.memory_space<vmem>>, vector<64x8xf32>,
    return
  }
  func.func @transform_0(%arg0: i32) -> (i32, i32) {
    %c0_i32 = arith.constant 0 : i32
    %c0_i32_0 = arith.constant 0 : i32
    return %arg0, %c0_i32 : i32, i32
  }
  func.func @transform_1(%arg0: i32) -> (i32, i32) {
    %c0_i32 = arith.constant 0 : i32
    %c0_i32_0 = arith.constant 0 : i32
    %c0_i32_1 = arith.constant 0 : i32
    return %c0_i32, %c0_i32_0 : i32, i32
  }
  func.func @transform_2(%arg0: i32) -> (i32, i32) {
    %c0_i32 = arith.constant 0 : i32
    %c0_i32_0 = arith.constant 0 : i32
    %c0_i32_1 = arith.constant 0 : i32
    return %c0_i32, %c0_i32_0 : i32, i32
  }
  func.func @transform_3(%arg0: i32) -> (i32, i32) {
    %c0_i32 = arith.constant 0 : i32
    %c0_i32_0 = arith.constant 0 : i32
    %c0_i32_1 = arith.constant 0 : i32
    return %c0_i32, %c0_i32_0 : i32, i32
  }
  func.func @transform_4(%arg0: i32) -> (i32, i32) {
    %c0_i32 = arith.constant 0 : i32
    %c0_i32_0 = arith.constant 0 : i32
    %c0_i32_1 = arith.constant 0 : i32
    return %c0_i32, %c0_i32_0 : i32, i32
  }
  func.func @transform_5(%arg0: i32) -> (i32, i32) {
    %c0_i32 = arith.constant 0 : i32
    %c0_i32_0 = arith.constant 0 : i32
    %c0_i32_1 = arith.constant 0 : i32
    return %c0_i32, %c0_i32_0 : i32, i32
  }
  func.func @transform_6(%arg0: i32) -> (i32, i32) {
    %c0_i32 = arith.constant 0 : i32
    %c0_i32_0 = arith.constant 0 : i32
    %c0_i32_1 = arith.constant 0 : i32
    return %c0_i32, %c0_i32_0 : i32, i32
  }
  func.func @transform_7(%arg0: i32) -> (i32, i32) {
    %c0_i32 = arith.constant 0 : i32
    %c0_i32_0 = arith.constant 0 : i32
    return %arg0, %c0_i32 : i32, i32
  }
}

</mosaic_0001>

<llo_original>
// kernel: tpu_custom_call.1
$region0: #{tpu_custom_call.1}
  #allocation0 [shape = 'u32[]', space=smem, size = 0x4, offset = 0x4, fixed_abs, tag = 'smem constant byte address 0x4 - core index']
  #allocation1 [shape = 'u32[144,128]{1,0:T(1,128)}', space=vmem, size = 0x12000, scoped, tag = 'internal scratch']
  %s0 = inlined_call_operand.vmem [shape: f32[128,16], index: 0, kind: input, shape index: {}]
  %s1 = inlined_call_operand.vmem [shape: f32[16,128], index: 1, kind: input, shape index: {}]
  %s2 = inlined_call_operand.vmem [shape: f32[1,128], index: 2, kind: input, shape index: {}]
  %s3 = inlined_call_operand.vmem [shape: f32[128,128], index: 3, kind: input, shape index: {}]
  %s4 = inlined_call_operand.vmem [shape: f32[1,128], index: 4, kind: input, shape index: {}]
  %s5 = inlined_call_operand.vmem [shape: f32[128,8], index: 5, kind: input, shape index: {}]
  %s6 = inlined_call_operand.vmem [shape: f32[1,8], index: 6, kind: input, shape index: {}]
  %s7 = inlined_call_operand.vmem [shape: f32[128,8], index: 7, kind: output, shape index: {}]
  %s8 = sld [smem:[#allocation0]]
  $region61: #{tpu_custom_call.1} parent=0
    _
  %s10 = ssub.s32 1, %s8
  %s11 = scalar_select 0, %s10, %s8
  loop: start=0, step=1, limit=4
  $region2: #{tpu_custom_call.1} parent=0 // loop_pre_header
    _
  $region3: #{tpu_custom_call.1} parent=0 // loop_header
    %s13 = sphi 0, %s17
    %p14 = scmp.ge.s32.totalorder %s13, 4
    %s23 = sphi 0, %s25
    %s26 = sphi 0, %s23
    %s27 = sphi 0, %s26
    %s43 = sphi 0, %s27
    %s47 = sphi 0, %s47
    %s49 = sphi 0, %s47
    %s50 = sphi 0, %s49
    %s64 = sphi 0, %s50
    %s68 = sphi 0, %s68
    %s70 = sphi 0, %s68
    %s71 = sphi 0, %s70
    %s85 = sphi 0, %s71
    %s89 = sphi 0, %s89
    %s91 = sphi 0, %s89
    %s92 = sphi 0, %s91
    %s106 = sphi 0, %s92
    %s110 = sphi 0, %s110
    %s112 = sphi 0, %s110
    %s113 = sphi 0, %s112
    %s127 = sphi 0, %s113
    %s131 = sphi 0, %s131
    %s133 = sphi 0, %s131
    %s134 = sphi 0, %s133
    %s148 = sphi 0, %s134
    %s152 = sphi 0, %s152
    %s154 = sphi 0, %s152
    %s155 = sphi 0, %s154
    %s169 = sphi 0, %s155
    %s175 = sphi 0, %s177
    %s178 = sphi 0, %s175
    %s179 = sphi 0, %s178
    %s195 = sphi 0, %s179
  $region4: #{tpu_custom_call.1} parent=0 // loop_header_branch
    %16 = sbr.rel (%p14) target = $region8
  $region5: #{tpu_custom_call.1} parent=0 // loop_body
    %s18 = ssub.s32 %s13, 1
    %s19 = ssub.s32 %s13, 2
    %s20 = sadd.s32 %s13, 1
    %s21 = ssub.s32 %s13, %s20
    %p22 = scmp.eq.s32.totalorder %s21, 0
    %s24 = sadd.s32 %s23, 1
    %s25 = scalar_select %p22, %s23, %s24
    %p28 = pneg %p22
    %p29 = scmp.eq.s32.totalorder %s13, 1
    %p30 = por %p28, %p29
    %p31 = scmp.ne.s32.totalorder %s23, %s26
    %p32 = scmp.eq.s32.totalorder %s13, 0
    %p33 = por %p31, %p32
    %p34 = scmp.ne.s32.totalorder %s23, %s26
    %p35 = scmp.eq.s32.totalorder %s18, 1
    %p36 = por %p34, %p35
    %p37 = scmp.ne.s32.totalorder %s26, %s27
    %p38 = scmp.eq.s32.totalorder %s18, 0
    %p39 = por %p37, %p38
    %p40 = scmp.ne.s32.totalorder %s26, %s27
    %p41 = scmp.eq.s32.totalorder %s19, 1
    %p42 = por %p40, %p41
    %p44 = scmp.ne.s32.totalorder %s27, %s43
    %p45 = scmp.eq.s32.totalorder %s19, 0
    %p46 = por %p44, %p45
    %s48 = sadd.s32 %s47, 1
    %p51 = scmp.eq.s32.totalorder %s13, 1
    %p52 = scmp.ne.s32.totalorder %s47, %s49
    %p53 = scmp.eq.s32.totalorder %s13, 0
    %p54 = por %p52, %p53
    %p55 = scmp.ne.s32.totalorder %s47, %s49
    %p56 = scmp.eq.s32.totalorder %s18, 1
    %p57 = por %p55, %p56
    %p58 = scmp.ne.s32.totalorder %s49, %s50
    %p59 = scmp.eq.s32.totalorder %s18, 0
    %p60 = por %p58, %p59
    %p61 = scmp.ne.s32.totalorder %s49, %s50
    %p62 = scmp.eq.s32.totalorder %s19, 1
    %p63 = por %p61, %p62
    %p65 = scmp.ne.s32.totalorder %s50, %s64
    %p66 = scmp.eq.s32.totalorder %s19, 0
    %p67 = por %p65, %p66
    %s69 = sadd.s32 %s68, 1
    %p72 = scmp.eq.s32.totalorder %s13, 1
    %p73 = scmp.ne.s32.totalorder %s68, %s70
    %p74 = scmp.eq.s32.totalorder %s13, 0
    %p75 = por %p73, %p74
    %p76 = scmp.ne.s32.totalorder %s68, %s70
    %p77 = scmp.eq.s32.totalorder %s18, 1
    %p78 = por %p76, %p77
    %p79 = scmp.ne.s32.totalorder %s70, %s71
    %p80 = scmp.eq.s32.totalorder %s18, 0
    %p81 = por %p79, %p80
    %p82 = scmp.ne.s32.totalorder %s70, %s71
    %p83 = scmp.eq.s32.totalorder %s19, 1
    %p84 = por %p82, %p83
    %p86 = scmp.ne.s32.totalorder %s71, %s85
    %p87 = scmp.eq.s32.totalorder %s19, 0
    %p88 = por %p86, %p87
    %s90 = sadd.s32 %s89, 1
    %p93 = scmp.eq.s32.totalorder %s13, 1
    %p94 = scmp.ne.s32.totalorder %s89, %s91
    %p95 = scmp.eq.s32.totalorder %s13, 0
    %p96 = por %p94, %p95
    %p97 = scmp.ne.s32.totalorder %s89, %s91
    %p98 = scmp.eq.s32.totalorder %s18, 1
    %p99 = por %p97, %p98
    %p100 = scmp.ne.s32.totalorder %s91, %s92
    %p101 = scmp.eq.s32.totalorder %s18, 0
    %p102 = por %p100, %p101
    %p103 = scmp.ne.s32.totalorder %s91, %s92
    %p104 = scmp.eq.s32.totalorder %s19, 1
    %p105 = por %p103, %p104
    %p107 = scmp.ne.s32.totalorder %s92, %s106
    %p108 = scmp.eq.s32.totalorder %s19, 0
    %p109 = por %p107, %p108
    %s111 = sadd.s32 %s110, 1
    %p114 = scmp.eq.s32.totalorder %s13, 1
    %p115 = scmp.ne.s32.totalorder %s110, %s112
    %p116 = scmp.eq.s32.totalorder %s13, 0
    %p117 = por %p115, %p116
    %p118 = scmp.ne.s32.totalorder %s110, %s112
    %p119 = scmp.eq.s32.totalorder %s18, 1
    %p120 = por %p118, %p119
    %p121 = scmp.ne.s32.totalorder %s112, %s113
    %p122 = scmp.eq.s32.totalorder %s18, 0
    %p123 = por %p121, %p122
    %p124 = scmp.ne.s32.totalorder %s112, %s113
    %p125 = scmp.eq.s32.totalorder %s19, 1
    %p126 = por %p124, %p125
    %p128 = scmp.ne.s32.totalorder %s113, %s127
    %p129 = scmp.eq.s32.totalorder %s19, 0
    %p130 = por %p128, %p129
    %s132 = sadd.s32 %s131, 1
    %p135 = scmp.eq.s32.totalorder %s13, 1
    %p136 = scmp.ne.s32.totalorder %s131, %s133
    %p137 = scmp.eq.s32.totalorder %s13, 0
    %p138 = por %p136, %p137
    %p139 = scmp.ne.s32.totalorder %s131, %s133
    %p140 = scmp.eq.s32.totalorder %s18, 1
    %p141 = por %p139, %p140
    %p142 = scmp.ne.s32.totalorder %s133, %s134
    %p143 = scmp.eq.s32.totalorder %s18, 0
    %p144 = por %p142, %p143
    %p145 = scmp.ne.s32.totalorder %s133, %s134
    %p146 = scmp.eq.s32.totalorder %s19, 1
    %p147 = por %p145, %p146
    %p149 = scmp.ne.s32.totalorder %s134, %s148
    %p150 = scmp.eq.s32.totalorder %s19, 0
    %p151 = por %p149, %p150
    %s153 = sadd.s32 %s152, 1
    %p156 = scmp.eq.s32.totalorder %s13, 1
    %p157 = scmp.ne.s32.totalorder %s152, %s154
    %p158 = scmp.eq.s32.totalorder %s13, 0
    %p159 = por %p157, %p158
    %p160 = scmp.ne.s32.totalorder %s152, %s154
    %p161 = scmp.eq.s32.totalorder %s18, 1
    %p162 = por %p160, %p161
    %p163 = scmp.ne.s32.totalorder %s154, %s155
    %p164 = scmp.eq.s32.totalorder %s18, 0
    %p165 = por %p163, %p164
    %p166 = scmp.ne.s32.totalorder %s154, %s155
    %p167 = scmp.eq.s32.totalorder %s19, 1
    %p168 = por %p166, %p167
    %p170 = scmp.ne.s32.totalorder %s155, %s169
    %p171 = scmp.eq.s32.totalorder %s19, 0
    %p172 = por %p170, %p171
    %s173 = ssub.s32 %s13, %s20
    %p174 = scmp.eq.s32.totalorder %s173, 0
    %s176 = sadd.s32 %s175, 1
    %s177 = scalar_select %p174, %s175, %s176
    %p180 = pneg %p174
    %p181 = scmp.eq.s32.totalorder %s13, 1
    %p182 = por %p180, %p181
    %p183 = scmp.ne.s32.totalorder %s175, %s178
    %p184 = scmp.eq.s32.totalorder %s13, 0
    %p185 = por %p183, %p184
    %p186 = scmp.ne.s32.totalorder %s175, %s178
    %p187 = scmp.eq.s32.totalorder %s18, 1
    %p188 = por %p186, %p187
    %p189 = scmp.ne.s32.totalorder %s178, %s179
    %p190 = scmp.eq.s32.totalorder %s18, 0
    %p191 = por %p189, %p190
    %p192 = scmp.ne.s32.totalorder %s178, %s179
    %p193 = scmp.eq.s32.totalorder %s19, 1
    %p194 = por %p192, %p193
    %p196 = scmp.ne.s32.totalorder %s179, %s195
    %p197 = scmp.eq.s32.totalorder %s19, 0
    %p198 = por %p196, %p197
    %p199 = scmp.le.s32.totalorder 1, %s13
    %p200 = scmp.lt.s32.totalorder %s13, 3
    %p201 = pnand %p199, %p200
    %p202 = pneg %p201
    // Predicated region
    $region9: #{tpu_custom_call.1} parent=5 // pred_check
      _
    $region10: #{tpu_custom_call.1} parent=5 // pred_check_branch
      %204 = sbr.rel (%p201) target = $region12
    $region11: #{tpu_custom_call.1} parent=5 // pred_region
      %s205 = ssub.s32 %s13, 1
      // Predicated region
      $region13: #{tpu_custom_call.1} parent=11 // pred_check
        %p206 = pneg %p60
      $region14: #{tpu_custom_call.1} parent=11 // pred_check_branch
        %208 = sbr.rel (%p206) target = $region16
      $region15: #{tpu_custom_call.1} parent=11 // pred_region
        _
      $region16: #{tpu_custom_call.1} parent=11 // pred_fallthru
        _
      // Predicated region
      $region17: #{tpu_custom_call.1} parent=11 // pred_check
        %p209 = pneg %p81
      $region18: #{tpu_custom_call.1} parent=11 // pred_check_branch
        %211 = sbr.rel (%p209) target = $region20
      $region19: #{tpu_custom_call.1} parent=11 // pred_region
        _
      $region20: #{tpu_custom_call.1} parent=11 // pred_fallthru
        _
      // Predicated region
      $region21: #{tpu_custom_call.1} parent=11 // pred_check
        %p212 = pneg %p102
      $region22: #{tpu_custom_call.1} parent=11 // pred_check_branch
        %214 = sbr.rel (%p212) target = $region24
      $region23: #{tpu_custom_call.1} parent=11 // pred_region
        _
      $region24: #{tpu_custom_call.1} parent=11 // pred_fallthru
        _
      // Predicated region
      $region25: #{tpu_custom_call.1} parent=11 // pred_check
        %p215 = pneg %p123
      $region26: #{tpu_custom_call.1} parent=11 // pred_check_branch
        %217 = sbr.rel (%p215) target = $region28
      $region27: #{tpu_custom_call.1} parent=11 // pred_region
        _
      $region28: #{tpu_custom_call.1} parent=11 // pred_fallthru
        _
      // Predicated region
      $region29: #{tpu_custom_call.1} parent=11 // pred_check
        %p218 = pneg %p144
      $region30: #{tpu_custom_call.1} parent=11 // pred_check_branch
        %220 = sbr.rel (%p218) target = $region32
      $region31: #{tpu_custom_call.1} parent=11 // pred_region
        _
      $region32: #{tpu_custom_call.1} parent=11 // pred_fallthru
        _
      // Predicated region
      $region33: #{tpu_custom_call.1} parent=11 // pred_check
        %p221 = pneg %p165
      $region34: #{tpu_custom_call.1} parent=11 // pred_check_branch
        %223 = sbr.rel (%p221) target = $region36
      $region35: #{tpu_custom_call.1} parent=11 // pred_region
        _
      $region36: #{tpu_custom_call.1} parent=11 // pred_fallthru
        _
    $region12: #{tpu_custom_call.1} parent=5 // pred_fallthru
      _
    %p224 = scmp.lt.s32.totalorder %s13, 2
    // Predicated region
    $region37: #{tpu_custom_call.1} parent=5 // pred_check
      %p225 = pneg %p224
    $region38: #{tpu_custom_call.1} parent=5 // pred_check_branch
      %227 = sbr.rel (%p225) target = $region40
    $region39: #{tpu_custom_call.1} parent=5 // pred_region
      // Predicated region
      $region41: #{tpu_custom_call.1} parent=39 // pred_check
        %p228 = pneg %p33
      $region42: #{tpu_custom_call.1} parent=39 // pred_check_branch
        %230 = sbr.rel (%p228) target = $region44
      $region43: #{tpu_custom_call.1} parent=39 // pred_region
        %s231 = smul.u32 8, %s13
        %p232 = scmp.lt.s32.totalorder %s231, 15
        %s233 = scalar_select %p232, %s231, 15
        %s234 = smul.addr %s233, 8
        %s235 = scalar_lea.vmem %s0, %s234
        %s236 = smul.u32 8, %s13
      $region44: #{tpu_custom_call.1} parent=39 // pred_fallthru
        _
    $region40: #{tpu_custom_call.1} parent=5 // pred_fallthru
      _
    %p237 = scmp.le.s32.totalorder 1, %s13
    %p238 = scmp.lt.s32.totalorder %s13, 3
    %p239 = pnand %p237, %p238
    %p240 = pneg %p239
    // Predicated region
    $region45: #{tpu_custom_call.1} parent=5 // pred_check
      _
    $region46: #{tpu_custom_call.1} parent=5 // pred_check_branch
      %242 = sbr.rel (%p239) target = $region48
    $region47: #{tpu_custom_call.1} parent=5 // pred_region
      %s243 = ssub.s32 %s13, 1
      %s244 = smul.u32 8, %s18
      %p245 = scmp.lt.s32.totalorder %s244, 15
      %s246 = scalar_select %p245, %s244, 15
      %s247 = smul.addr %s246, 8
      %s248 = scalar_lea.vmem %s0, %s247
      %p249 = pneg %p39
      %p250 = pneg %p36
      %p251 = pneg %p60
      %p252 = pneg %p57
      %p253 = pneg %p81
      %p254 = pneg %p78
      %p255 = pneg %p102
      %p256 = pneg %p99
      %p257 = pneg %p123
      %p258 = pneg %p120
      %p259 = pneg %p144
      %p260 = pneg %p141
      %p261 = pneg %p165
      %p262 = pneg %p162
      %p263 = pneg %p191
      %p264 = pneg %p188
      %s265 = smul.u32 8, %s18
      %p266 = scmp.lt.s32.totalorder %s265, 15
      %s267 = scalar_select %p266, %s265, 15
      %s268 = smul.addr %s267, 8
      %s269 = scalar_lea.vmem %s7, %s268
      %s270 = smul.u32 8, %s18
      %p271 = scmp.lt.s32.totalorder %s270, 15
      %s272 = scalar_select %p271, %s270, 15
      %s273 = smul.addr %s272, 8
      %s274 = scalar_lea.vmem %s0, %s273
      %s275 = smul.u32 8, %s18
      %s276 = smul.u32 8, %s18
      %p277 = scmp.lt.s32.totalorder %s276, 15
      %s278 = scalar_select %p277, %s276, 15
      %s279 = smul.addr %s278, 8
      %s280 = scalar_lea.vmem %s7, %s279
      %s281 = smul.u32 8, %s18
      %v282 = vld [vmem:[%s274] sm:$0xff]
      %v283 = vld [vmem:[%s274 + $0x8] sm:$0xff]
      %v284 = vld [vmem:[%s274 + $0x10] sm:$0xff]
      %v285 = vld [vmem:[%s274 + $0x18] sm:$0xff]
      %v286 = vld [vmem:[%s274 + $0x20] sm:$0xff]
      %v287 = vld [vmem:[%s274 + $0x28] sm:$0xff]
      %v288 = vld [vmem:[%s274 + $0x30] sm:$0xff]
      %v289 = vld [vmem:[%s274 + $0x38] sm:$0xff]
      %v290 = vld [vmem:[%s1] sm:$0xff]
      %v291 = vld [vmem:[%s1 + $0x8] sm:$0xff]
      %v292 = vld [vmem:[%s2] sm:$0x1]
      %v294 = vlaneseq
      %v295 = vshrl.u32 %v294, 7
      %v296 = vsub.s32 0, %v295
      %v297 = vrot.slane %v292, %v296
      %vm299 = vcmask 130048
      %v301 = vsel %vm299, %v282, 0
      %v304 = vsel %vm299, %v283, 0
      %v307 = vsel %vm299, %v284, 0
      %v310 = vsel %vm299, %v285, 0
      %v313 = vsel %vm299, %v286, 0
      %v316 = vsel %vm299, %v287, 0
      %v319 = vsel %vm299, %v288, 0
      %v322 = vsel %vm299, %v289, 0
      %324 = vmatprep.subr.mxu0 0.0
      %325 = vmatpush1.msra.mxu0 %v290
      %326 = vmatprep.subr.mxu0 0.0
      %327 = vmatpush1.msra.mxu0 %v291
      %328 = vmatprep.subr.mxu0 0.0
      %329 = vmatpush1.msra.mxu0 0.0
      %330 = vmatprep.subr.mxu0 0.0
      %331 = vmatpush1.msra.mxu0 0.0
      %332 = vmatprep.subr.mxu0 0.0
      %333 = vmatpush1.msra.mxu0 0.0
      %334 = vmatprep.subr.mxu0 0.0
      %335 = vmatpush1.msra.mxu0 0.0
      %336 = vmatprep.subr.mxu0 0.0
      %337 = vmatpush1.msra.mxu0 0.0
      %338 = vmatprep.subr.mxu0 0.0
      %339 = vmatpush1.msra.mxu0 0.0
      %340 = vmatprep.subr.mxu0 0.0
      %341 = vmatpush1.msra.mxu0 0.0
      %342 = vmatprep.subr.mxu0 0.0
      %343 = vmatpush1.msra.mxu0 0.0
      %344 = vmatprep.subr.mxu0 0.0
      %345 = vmatpush1.msra.mxu0 0.0
      %346 = vmatprep.subr.mxu0 0.0
      %347 = vmatpush1.msra.mxu0 0.0
      %348 = vmatprep.subr.mxu0 0.0
      %349 = vmatpush1.msra.mxu0 0.0
      %350 = vmatprep.subr.mxu0 0.0
      %351 = vmatpush1.msra.mxu0 0.0
      %352 = vmatprep.subr.mxu0 0.0
      %353 = vmatpush1.msra.mxu0 0.0
      %354 = vmatprep.subr.mxu0 0.0
      %355 = vmatpush1.msra.mxu0 0.0
      %356 = vmatprep.subr.mxu0 0.0
      %357 = vmatpush1.msra.mxu0 0.0
      %358 = vmatprep.subr.mxu0 0.0
      %359 = vmatpush1.msra.mxu0 0.0
      %360 = vmatprep.subr.mxu0 0.0
      %361 = vmatpush1.msra.mxu0 0.0
      %362 = vmatprep.subr.mxu0 0.0
      %363 = vmatpush1.msra.mxu0 0.0
      %364 = vmatprep.subr.mxu0 0.0
      %365 = vmatpush1.msra.mxu0 0.0
      %366 = vmatprep.subr.mxu0 0.0
      %367 = vmatpush1.msra.mxu0 0.0
      %368 = vmatprep.subr.mxu0 0.0
      %369 = vmatpush1.msra.mxu0 0.0
      %370 = vmatprep.subr.mxu0 0.0
      %371 = vmatpush1.msra.mxu0 0.0
      %372 = vmatprep.subr.mxu0 0.0
      %373 = vmatpush1.msra.mxu0 0.0
      %374 = vmatprep.subr.mxu0 0.0
      %375 = vmatpush1.msra.mxu0 0.0
      %376 = vmatprep.subr.mxu0 0.0
      %377 = vmatpush1.msra.mxu0 0.0
      %378 = vmatprep.subr.mxu0 0.0
      %379 = vmatpush1.msra.mxu0 0.0
      %380 = vmatprep.subr.mxu0 0.0
      %381 = vmatpush1.msra.mxu0 0.0
      %382 = vmatprep.subr.mxu0 0.0
      %383 = vmatpush1.msra.mxu0 0.0
      %384 = vmatprep.subr.mxu0 0.0
      %385 = vmatpush1.msra.mxu0 0.0
      %386 = vmatprep.subr.mxu0 0.0
      %387 = vmatpush1.msra.mxu0 0.0
      %388 = vmatprep.mubr.f32.mxu0 0.0
      %389 = vmatmul.mubr.f32.gmra.mrb[0].mxu0 %v301
      %v390 = vpop.f32.mrb[0].mxu0
      %v391 = vadd.f32 %v297, %v390
      %v392 = vpop.f32.mrb[0].mxu0
      %393 = vmatprep.mubr.f32.mxu0 0.0
      %394 = vmatmul.mubr.f32.gmra.mrb[0].mxu0 %v304
      %v395 = vpop.f32.mrb[0].mxu0
      %v396 = vadd.f32 %v297, %v395
      %v397 = vpop.f32.mrb[0].mxu0
      %398 = vmatprep.mubr.f32.mxu0 0.0
      %399 = vmatmul.mubr.f32.gmra.mrb[0].mxu0 %v307
      %v400 = vpop.f32.mrb[0].mxu0
      %v401 = vadd.f32 %v297, %v400
      %v402 = vpop.f32.mrb[0].mxu0
      %403 = vmatprep.mubr.f32.mxu0 0.0
      %404 = vmatmul.mubr.f32.gmra.mrb[0].mxu0 %v310
      %v405 = vpop.f32.mrb[0].mxu0
      %v406 = vadd.f32 %v297, %v405
      %v407 = vpop.f32.mrb[0].mxu0
      %408 = vmatprep.mubr.f32.mxu0 0.0
      %409 = vmatmul.mubr.f32.gmra.mrb[0].mxu0 %v313
      %v410 = vpop.f32.mrb[0].mxu0
      %v411 = vadd.f32 %v297, %v410
      %v412 = vpop.f32.mrb[0].mxu0
      %413 = vmatprep.mubr.f32.mxu0 0.0
      %414 = vmatmul.mubr.f32.gmra.mrb[0].mxu0 %v316
      %v415 = vpop.f32.mrb[0].mxu0
      %v416 = vadd.f32 %v297, %v415
      %v417 = vpop.f32.mrb[0].mxu0
      %418 = vmatprep.mubr.f32.mxu0 0.0
      %419 = vmatmul.mubr.f32.gmra.mrb[0].mxu0 %v319
      %v420 = vpop.f32.mrb[0].mxu0
      %v421 = vadd.f32 %v297, %v420
      %v422 = vpop.f32.mrb[0].mxu0
      %423 = vmatprep.mubr.f32.mxu0 0.0
      %424 = vmatmul.mubr.f32.gmra.mrb[0].mxu0 %v322
      %v425 = vpop.f32.mrb[0].mxu0
      %v426 = vadd.f32 %v297, %v425
      %v427 = vpop.f32.mrb[0].mxu0
      %428 = vdwg.mxu0
      %v429 = vmax.f32 %v391, 0.0
      %v430 = vmax.f32 %v396, 0.0
      %v431 = vmax.f32 %v401, 0.0
      %v432 = vmax.f32 %v406, 0.0
      %v433 = vmax.f32 %v411, 0.0
      %v434 = vmax.f32 %v416, 0.0
      %v435 = vmax.f32 %v421, 0.0
      %v436 = vmax.f32 %v426, 0.0
      %v437 = vld [vmem:[%s3] sm:$0xff]
      %v438 = vld [vmem:[%s3 + $0x8] sm:$0xff]
      %v439 = vld [vmem:[%s3 + $0x10] sm:$0xff]
      %v440 = vld [vmem:[%s3 + $0x18] sm:$0xff]
      %v441 = vld [vmem:[%s3 + $0x20] sm:$0xff]
      %v442 = vld [vmem:[%s3 + $0x28] sm:$0xff]
      %v443 = vld [vmem:[%s3 + $0x30] sm:$0xff]
      %v444 = vld [vmem:[%s3 + $0x38] sm:$0xff]
      %v445 = vld [vmem:[%s3 + $0x40] sm:$0xff]
      %v446 = vld [vmem:[%s3 + $0x48] sm:$0xff]
      %v447 = vld [vmem:[%s3 + $0x50] sm:$0xff]
      %v448 = vld [vmem:[%s3 + $0x58] sm:$0xff]
      %v449 = vld [vmem:[%s3 + $0x60] sm:$0xff]
      %v450 = vld [vmem:[%s3 + $0x68] sm:$0xff]
      %v451 = vld [vmem:[%s3 + $0x70] sm:$0xff]
      %v452 = vld [vmem:[%s3 + $0x78] sm:$0xff]
      %v453 = vld [vmem:[%s4] sm:$0x1]
      %v455 = vlaneseq
      %v456 = vshrl.u32 %v455, 7
      %v457 = vsub.s32 0, %v456
      %v458 = vrot.slane %v453, %v457
      %460 = vmatprep.subr.mxu0 0.0
      %461 = vmatpush1.msra.mxu0 %v437
      %462 = vmatprep.subr.mxu0 0.0
      %463 = vmatpush1.msra.mxu0 %v438
      %464 = vmatprep.subr.mxu0 0.0
      %465 = vmatpush1.msra.mxu0 %v439
      %466 = vmatprep.subr.mxu0 0.0
      %467 = vmatpush1.msra.mxu0 %v440
      %468 = vmatprep.subr.mxu0 0.0
      %469 = vmatpush1.msra.mxu0 %v441
      %470 = vmatprep.subr.mxu0 0.0
      %471 = vmatpush1.msra.mxu0 %v442
      %472 = vmatprep.subr.mxu0 0.0
      %473 = vmatpush1.msra.mxu0 %v443
      %474 = vmatprep.subr.mxu0 0.0
      %475 = vmatpush1.msra.mxu0 %v444
      %476 = vmatprep.subr.mxu0 0.0
      %477 = vmatpush1.msra.mxu0 %v445
      %478 = vmatprep.subr.mxu0 0.0
      %479 = vmatpush1.msra.mxu0 %v446
      %480 = vmatprep.subr.mxu0 0.0
      %481 = vmatpush1.msra.mxu0 %v447
      %482 = vmatprep.subr.mxu0 0.0
      %483 = vmatpush1.msra.mxu0 %v448
      %484 = vmatprep.subr.mxu0 0.0
      %485 = vmatpush1.msra.mxu0 %v449
      %486 = vmatprep.subr.mxu0 0.0
      %487 = vmatpush1.msra.mxu0 %v450
      %488 = vmatprep.subr.mxu0 0.0
      %489 = vmatpush1.msra.mxu0 %v451
      %490 = vmatprep.subr.mxu0 0.0
      %491 = vmatpush1.msra.mxu0 %v452
      %492 = vmatprep.subr.mxu0 0.0
      %493 = vmatpush1.msra.mxu0 0.0
      %494 = vmatprep.subr.mxu0 0.0
      %495 = vmatpush1.msra.mxu0 0.0
      %496 = vmatprep.subr.mxu0 0.0
      %497 = vmatpush1.msra.mxu0 0.0
      %498 = vmatprep.subr.mxu0 0.0
      %499 = vmatpush1.msra.mxu0 0.0
      %500 = vmatprep.subr.mxu0 0.0
      %501 = vmatpush1.msra.mxu0 0.0
      %502 = vmatprep.subr.mxu0 0.0
      %503 = vmatpush1.msra.mxu0 0.0
      %504 = vmatprep.subr.mxu0 0.0
      %505 = vmatpush1.msra.mxu0 0.0
      %506 = vmatprep.subr.mxu0 0.0
      %507 = vmatpush1.msra.mxu0 0.0
      %508 = vmatprep.subr.mxu0 0.0
      %509 = vmatpush1.msra.mxu0 0.0
      %510 = vmatprep.subr.mxu0 0.0
      %511 = vmatpush1.msra.mxu0 0.0
      %512 = vmatprep.subr.mxu0 0.0
      %513 = vmatpush1.msra.mxu0 0.0
      %514 = vmatprep.subr.mxu0 0.0
      %515 = vmatpush1.msra.mxu0 0.0
      %516 = vmatprep.subr.mxu0 0.0
      %517 = vmatpush1.msra.mxu0 0.0
      %518 = vmatprep.subr.mxu0 0.0
      %519 = vmatpush1.msra.mxu0 0.0
      %520 = vmatprep.subr.mxu0 0.0
      %521 = vmatpush1.msra.mxu0 0.0
      %522 = vmatprep.subr.mxu0 0.0
      %523 = vmatpush1.msra.mxu0 0.0
      %524 = vmatprep.mubr.f32.mxu0 0.0
      %525 = vmatmul.mubr.f32.gmra.mrb[0].mxu0 %v429
      %v526 = vpop.f32.mrb[0].mxu0
      %v527 = vadd.f32 %v458, %v526
      %v528 = vpop.f32.mrb[0].mxu0
      %529 = vmatprep.mubr.f32.mxu0 0.0
      %530 = vmatmul.mubr.f32.gmra.mrb[0].mxu0 %v430
      %v531 = vpop.f32.mrb[0].mxu0
      %v532 = vadd.f32 %v458, %v531
      %v533 = vpop.f32.mrb[0].mxu0
      %534 = vmatprep.mubr.f32.mxu0 0.0
      %535 = vmatmul.mubr.f32.gmra.mrb[0].mxu0 %v431
      %v536 = vpop.f32.mrb[0].mxu0
      %v537 = vadd.f32 %v458, %v536
      %v538 = vpop.f32.mrb[0].mxu0
      %539 = vmatprep.mubr.f32.mxu0 0.0
      %540 = vmatmul.mubr.f32.gmra.mrb[0].mxu0 %v432
      %v541 = vpop.f32.mrb[0].mxu0
      %v542 = vadd.f32 %v458, %v541
      %v543 = vpop.f32.mrb[0].mxu0
      %544 = vmatprep.mubr.f32.mxu0 0.0
      %545 = vmatmul.mubr.f32.gmra.mrb[0].mxu0 %v433
      %v546 = vpop.f32.mrb[0].mxu0
      %v547 = vadd.f32 %v458, %v546
      %v548 = vpop.f32.mrb[0].mxu0
      %549 = vmatprep.mubr.f32.mxu0 0.0
      %550 = vmatmul.mubr.f32.gmra.mrb[0].mxu0 %v434
      %v551 = vpop.f32.mrb[0].mxu0
      %v552 = vadd.f32 %v458, %v551
      %v553 = vpop.f32.mrb[0].mxu0
      %554 = vmatprep.mubr.f32.mxu0 0.0
      %555 = vmatmul.mubr.f32.gmra.mrb[0].mxu0 %v435
      %v556 = vpop.f32.mrb[0].mxu0
      %v557 = vadd.f32 %v458, %v556
      %v558 = vpop.f32.mrb[0].mxu0
      %559 = vmatprep.mubr.f32.mxu0 0.0
      %560 = vmatmul.mubr.f32.gmra.mrb[0].mxu0 %v436
      %v561 = vpop.f32.mrb[0].mxu0
      %v562 = vadd.f32 %v458, %v561
      %v563 = vpop.f32.mrb[0].mxu0
      %564 = vdwg.mxu0
      %v565 = vmax.f32 %v527, 0.0
      %v566 = vmax.f32 %v532, 0.0
      %v567 = vmax.f32 %v537, 0.0
      %v568 = vmax.f32 %v542, 0.0
      %v569 = vmax.f32 %v547, 0.0
      %v570 = vmax.f32 %v552, 0.0
      %v571 = vmax.f32 %v557, 0.0
      %v572 = vmax.f32 %v562, 0.0
      %v573 = vld [vmem:[%s5] sm:$0xff]
      %v574 = vld [vmem:[%s5 + $0x8] sm:$0xff]
      %v575 = vld [vmem:[%s5 + $0x10] sm:$0xff]
      %v576 = vld [vmem:[%s5 + $0x18] sm:$0xff]
      %v577 = vld [vmem:[%s5 + $0x20] sm:$0xff]
      %v578 = vld [vmem:[%s5 + $0x28] sm:$0xff]
      %v579 = vld [vmem:[%s5 + $0x30] sm:$0xff]
      %v580 = vld [vmem:[%s5 + $0x38] sm:$0xff]
      %v581 = vld [vmem:[%s5 + $0x40] sm:$0xff]
      %v582 = vld [vmem:[%s5 + $0x48] sm:$0xff]
      %v583 = vld [vmem:[%s5 + $0x50] sm:$0xff]
      %v584 = vld [vmem:[%s5 + $0x58] sm:$0xff]
      %v585 = vld [vmem:[%s5 + $0x60] sm:$0xff]
      %v586 = vld [vmem:[%s5 + $0x68] sm:$0xff]
      %v587 = vld [vmem:[%s5 + $0x70] sm:$0xff]
      %v588 = vld [vmem:[%s5 + $0x78] sm:$0xff]
      %v589 = vld [vmem:[%s6] sm:$0x1]
      %v591 = vlaneseq
      %v592 = vshrl.u32 %v591, 7
      %v593 = vsub.s32 0, %v592
      %v594 = vrot.slane %v589, %v593
      %596 = vmatprep.subr.mxu0 0.0
      %597 = vmatpush1.msra.mxu0 %v573
      %598 = vmatprep.subr.mxu0 0.0
      %599 = vmatpush1.msra.mxu0 %v574
      %600 = vmatprep.subr.mxu0 0.0
      %601 = vmatpush1.msra.mxu0 %v575
      %602 = vmatprep.subr.mxu0 0.0
      %603 = vmatpush1.msra.mxu0 %v576
      %604 = vmatprep.subr.mxu0 0.0
      %605 = vmatpush1.msra.mxu0 %v577
      %606 = vmatprep.subr.mxu0 0.0
      %607 = vmatpush1.msra.mxu0 %v578
      %608 = vmatprep.subr.mxu0 0.0
      %609 = vmatpush1.msra.mxu0 %v579
      %610 = vmatprep.subr.mxu0 0.0
      %611 = vmatpush1.msra.mxu0 %v580
      %612 = vmatprep.subr.mxu0 0.0
      %613 = vmatpush1.msra.mxu0 %v581
      %614 = vmatprep.subr.mxu0 0.0
      %615 = vmatpush1.msra.mxu0 %v582
      %616 = vmatprep.subr.mxu0 0.0
      %617 = vmatpush1.msra.mxu0 %v583
      %618 = vmatprep.subr.mxu0 0.0
      %619 = vmatpush1.msra.mxu0 %v584
      %620 = vmatprep.subr.mxu0 0.0
      %621 = vmatpush1.msra.mxu0 %v585
      %622 = vmatprep.subr.mxu0 0.0
      %623 = vmatpush1.msra.mxu0 %v586
      %624 = vmatprep.subr.mxu0 0.0
      %625 = vmatpush1.msra.mxu0 %v587
      %626 = vmatprep.subr.mxu0 0.0
      %627 = vmatpush1.msra.mxu0 %v588
      %628 = vmatprep.subr.mxu0 0.0
      %629 = vmatpush1.msra.mxu0 0.0
      %630 = vmatprep.subr.mxu0 0.0
      %631 = vmatpush1.msra.mxu0 0.0
      %632 = vmatprep.subr.mxu0 0.0
      %633 = vmatpush1.msra.mxu0 0.0
      %634 = vmatprep.subr.mxu0 0.0
      %635 = vmatpush1.msra.mxu0 0.0
      %636 = vmatprep.subr.mxu0 0.0
      %637 = vmatpush1.msra.mxu0 0.0
      %638 = vmatprep.subr.mxu0 0.0
      %639 = vmatpush1.msra.mxu0 0.0
      %640 = vmatprep.subr.mxu0 0.0
      %641 = vmatpush1.msra.mxu0 0.0
      %642 = vmatprep.subr.mxu0 0.0
      %643 = vmatpush1.msra.mxu0 0.0
      %644 = vmatprep.subr.mxu0 0.0
      %645 = vmatpush1.msra.mxu0 0.0
      %646 = vmatprep.subr.mxu0 0.0
      %647 = vmatpush1.msra.mxu0 0.0
      %648 = vmatprep.subr.mxu0 0.0
      %649 = vmatpush1.msra.mxu0 0.0
      %650 = vmatprep.subr.mxu0 0.0
      %651 = vmatpush1.msra.mxu0 0.0
      %652 = vmatprep.subr.mxu0 0.0
      %653 = vmatpush1.msra.mxu0 0.0
      %654 = vmatprep.subr.mxu0 0.0
      %655 = vmatpush1.msra.mxu0 0.0
      %656 = vmatprep.subr.mxu0 0.0
      %657 = vmatpush1.msra.mxu0 0.0
      %658 = vmatprep.subr.mxu0 0.0
      %659 = vmatpush1.msra.mxu0 0.0
      %660 = vmatprep.mubr.f32.mxu0 0.0
      %661 = vmatmul.mubr.f32.gmra.mrb[0].mxu0 %v565
      %v662 = vpop.f32.mrb[0].mxu0
      %v663 = vadd.f32 %v594, %v662
      %v664 = vpop.f32.mrb[0].mxu0
      %665 = vmatprep.mubr.f32.mxu0 0.0
      %666 = vmatmul.mubr.f32.gmra.mrb[0].mxu0 %v566
      %v667 = vpop.f32.mrb[0].mxu0
      %v668 = vadd.f32 %v594, %v667
      %v669 = vpop.f32.mrb[0].mxu0
      %670 = vmatprep.mubr.f32.mxu0 0.0
      %671 = vmatmul.mubr.f32.gmra.mrb[0].mxu0 %v567
      %v672 = vpop.f32.mrb[0].mxu0
      %v673 = vadd.f32 %v594, %v672
      %v674 = vpop.f32.mrb[0].mxu0
      %675 = vmatprep.mubr.f32.mxu0 0.0
      %676 = vmatmul.mubr.f32.gmra.mrb[0].mxu0 %v568
      %v677 = vpop.f32.mrb[0].mxu0
      %v678 = vadd.f32 %v594, %v677
      %v679 = vpop.f32.mrb[0].mxu0
      %680 = vmatprep.mubr.f32.mxu0 0.0
      %681 = vmatmul.mubr.f32.gmra.mrb[0].mxu0 %v569
      %v682 = vpop.f32.mrb[0].mxu0
      %v683 = vadd.f32 %v594, %v682
      %v684 = vpop.f32.mrb[0].mxu0
      %685 = vmatprep.mubr.f32.mxu0 0.0
      %686 = vmatmul.mubr.f32.gmra.mrb[0].mxu0 %v570
      %v687 = vpop.f32.mrb[0].mxu0
      %v688 = vadd.f32 %v594, %v687
      %v689 = vpop.f32.mrb[0].mxu0
      %690 = vmatprep.mubr.f32.mxu0 0.0
      %691 = vmatmul.mubr.f32.gmra.mrb[0].mxu0 %v571
      %v692 = vpop.f32.mrb[0].mxu0
      %v693 = vadd.f32 %v594, %v692
      %v694 = vpop.f32.mrb[0].mxu0
      %695 = vmatprep.mubr.f32.mxu0 0.0
      %696 = vmatmul.mubr.f32.gmra.mrb[0].mxu0 %v572
      %v697 = vpop.f32.mrb[0].mxu0
      %v698 = vadd.f32 %v594, %v697
      %v699 = vpop.f32.mrb[0].mxu0
      %700 = vdwg.mxu0
      %vm701 = vcmask 64512
      %702 = vst.msk [vmem:[%s280] sm:$0xff] %vm701, %v663
      %703 = vst.msk [vmem:[%s280 + $0x8] sm:$0xff] %vm701, %v668
      %704 = vst.msk [vmem:[%s280 + $0x10] sm:$0xff] %vm701, %v673
      %705 = vst.msk [vmem:[%s280 + $0x18] sm:$0xff] %vm701, %v678
      %706 = vst.msk [vmem:[%s280 + $0x20] sm:$0xff] %vm701, %v683
      %707 = vst.msk [vmem:[%s280 + $0x28] sm:$0xff] %vm701, %v688
      %708 = vst.msk [vmem:[%s280 + $0x30] sm:$0xff] %vm701, %v693
      %709 = vst.msk [vmem:[%s280 + $0x38] sm:$0xff] %vm701, %v698
      %s710 = smul.u32 8, %s18
      %p711 = scmp.lt.s32.totalorder %s710, 15
      %s712 = scalar_select %p711, %s710, 15
      %s713 = smul.addr %s712, 8
      %s714 = scalar_lea.vmem %s7, %s713
      // Predicated region
      $region49: #{tpu_custom_call.1} parent=47 // pred_check
        %p715 = pneg %p188
      $region50: #{tpu_custom_call.1} parent=47 // pred_check_branch
        %717 = sbr.rel (%p715) target = $region52
      $region51: #{tpu_custom_call.1} parent=47 // pred_region
        %s718 = smul.u32 8, %s18
      $region52: #{tpu_custom_call.1} parent=47 // pred_fallthru
        _
    $region48: #{tpu_custom_call.1} parent=5 // pred_fallthru
      _
    %p719 = scmp.le.s32.totalorder 2, %s13
    // Predicated region
    $region53: #{tpu_custom_call.1} parent=5 // pred_check
      %p720 = pneg %p719
    $region54: #{tpu_custom_call.1} parent=5 // pred_check_branch
      %722 = sbr.rel (%p720) target = $region56
    $region55: #{tpu_custom_call.1} parent=5 // pred_region
      %s723 = ssub.s32 %s13, 2
      // Predicated region
      $region57: #{tpu_custom_call.1} parent=55 // pred_check
        %p724 = pneg %p194
      $region58: #{tpu_custom_call.1} parent=55 // pred_check_branch
        %726 = sbr.rel (%p724) target = $region60
      $region59: #{tpu_custom_call.1} parent=55 // pred_region
        %s727 = smul.u32 8, %s19
        %p728 = scmp.lt.s32.totalorder %s727, 15
        %s729 = scalar_select %p728, %s727, 15
        %s730 = smul.addr %s729, 8
        %s731 = scalar_lea.vmem %s7, %s730
      $region60: #{tpu_custom_call.1} parent=55 // pred_fallthru
        _
    $region56: #{tpu_custom_call.1} parent=5 // pred_fallthru
      _
  $region6: #{tpu_custom_call.1} parent=0 // loop_footer
    %s17 = sadd.s32 1, %s13
  $region7: #{tpu_custom_call.1} parent=0 // loop_footer_branch
    %12 = sbr.rel target = $region3
  $region8: #{tpu_custom_call.1} parent=0 // loop_exit
    _

</llo_original>
